<compile_context>
chip_gen: v7x
topology: tpu7x:2x2x1
jax: 0.10.0
libtpu: 0.0.40
codegen_flags: <defaults>
</compile_context>

<pallas_src>
import functools
import math

import jax
import jax.numpy as jnp
from jax.experimental import pallas as pl
from jax.experimental.pallas import tpu as pltpu

GROUP_SIZE = 32           # k-diffusion ResConvBlock / AdaGN default
HEAD_SIZE = 64            # k-diffusion SelfAttention default

SEQ_TILE = 1024           # sequence tile for conv / groupnorm kernels (>=512 ~ HBM roofline)
ATTN_TILE = 512           # q / kv tile for flash attention
HALO = 8                  # sublane-aligned halo block for k=3 convs when the sequence is tiled
VMEM_LIMIT = 32 * 1024 * 1024   # explicit scoped-VMEM cap (safe on v5e / v6e / v7x)


# ----------------------------------------------------------------------------- helpers
def _gelu(x):
    # TODO(synk): PyTorch nn.GELU is erf-based; tanh approximation used (Mosaic-safe EUP path).
    return 0.5 * x * (1.0 + jnp.tanh(0.7978845608028654 * (x + 0.044715 * x * x * x)))


def _seq_tile(length, target):
    if length <= target:
        return length
    t = target
    while length % t != 0 and t > HALO:
        t //= 2
    return t if length % t == 0 else length


# ----------------------------------------------------------------------------- small dense kernels
def _linear_kernel(x_ref, w_ref, b_ref, o_ref, *, apply_gelu):
    y = jnp.dot(x_ref[...], w_ref[...], preferred_element_type=jnp.float32) + b_ref[...]
    if apply_gelu:
        y = _gelu(y)
    o_ref[...] = y


@functools.partial(jax.jit, static_argnums=(3,))
def linear_pallas(x, w, b, apply_gelu):
    # x: (M, K), w: (K, N), b: (N,)  — tiny (mapping-cond / AdaGN mappers), whole arrays in VMEM.
    M, _ = x.shape
    N = w.shape[1]
    return pl.pallas_call(
        functools.partial(_linear_kernel, apply_gelu=apply_gelu),
        out_shape=jax.ShapeDtypeStruct((M, N), jnp.float32),
    )(x, w, b.reshape(1, N))


def _mapping_kernel(x_ref, w1_ref, b1_ref, w2_ref, b2_ref, o_ref):
    h = _gelu(jnp.dot(x_ref[...], w1_ref[...], preferred_element_type=jnp.float32) + b1_ref[...])
    o_ref[...] = _gelu(jnp.dot(h, w2_ref[...], preferred_element_type=jnp.float32) + b2_ref[...])


@jax.jit
def mapping_pallas(x, w1, b1, w2, b2):
    # Fused MappingNet: (Linear + GELU) x 2 in a single pallas_call.
    M = x.shape[0]
    N = w2.shape[1]
    return pl.pallas_call(
        _mapping_kernel,
        out_shape=jax.ShapeDtypeStruct((M, N), jnp.float32),
    )(x, w1, b1.reshape(1, -1), w2, b2.reshape(1, -1))


# ----------------------------------------------------------------------------- GroupNorm statistics
def _gn_stats_kernel(x_ref, o_ref):
    @pl.when(pl.program_id(1) == 0)
    def _():
        o_ref[...] = jnp.zeros(o_ref.shape, o_ref.dtype)
    x = x_ref[0]                                           # (TL, C) f32
    s = jnp.sum(x, axis=0, keepdims=True)
    ss = jnp.sum(x * x, axis=0, keepdims=True)
    o_ref[0] = o_ref[0] + jnp.concatenate([s, ss], axis=0)  # (2, C)


@jax.jit
def gn_stats_pallas(x):
    # per-channel (sum, sum-of-squares) accumulated across L tiles -> (B, 2, C)
    B, L, C = x.shape
    TL = _seq_tile(L, SEQ_TILE)
    nl = L // TL
    return pl.pallas_call(
        _gn_stats_kernel,
        out_shape=jax.ShapeDtypeStruct((B, 2, C), jnp.float32),
        grid=(B, nl),
        in_specs=[pl.BlockSpec((1, TL, C), lambda b, i: (b, i, 0))],
        out_specs=pl.BlockSpec((1, 2, C), lambda b, i: (b, 0, 0)),
        compiler_params=pltpu.CompilerParams(
            dimension_semantics=("parallel", "arbitrary"),
            vmem_limit_bytes=VMEM_LIMIT),
    )(x)


def _adagn_affine(x, cond, mapper_w, mapper_b, num_groups):
    # Reduce per-channel stats to per-group mean/rstd and fold the conditional affine into a single
    # per-channel (a, b) pair: AdaGN(x) == x * a + b.  Tiny (B, C) math -> plain JAX glue.
    B, L, C = x.shape
    cg = C // num_groups
    stats = gn_stats_pallas(x)                                # (B, 2, C)
    wb = linear_pallas(cond, mapper_w, mapper_b, False)       # (B, 2C): [scale | shift]
    scale, shift = wb[:, :C], wb[:, C:]
    gsum = stats[:, 0].reshape(B, num_groups, cg).sum(-1)
    gsq = stats[:, 1].reshape(B, num_groups, cg).sum(-1)
    cnt = float(cg * L)
    mean = gsum / cnt
    var = gsq / cnt - mean * mean
    rstd = jax.lax.rsqrt(jnp.maximum(var, 0.0) + 1e-5)
    mean = jnp.repeat(mean, cg, axis=1)                       # (B, C)
    rstd = jnp.repeat(rstd, cg, axis=1)
    a = rstd * (scale + 1.0)
    b = shift - mean * a
    return jnp.stack([a, b], axis=1)                          # (B, 2, C)


# ----------------------------------------------------------------------------- fused AdaGN + conv
def _make_fused_gn_conv_kernel(*, ksize, apply_gelu, use_halo, skip_mode, split_qkv, q_scale, nl):
    def kernel(*refs):
        it = iter(refs)
        x_ref = next(it)
        if use_halo:
            ph_ref = next(it)
            nh_ref = next(it)
        ab_ref = next(it)
        w_ref = next(it)
        b_ref = next(it)
        if skip_mode != "none":
            skip_ref = next(it)
        if skip_mode == "conv":
            skip_w_ref = next(it)
        o_ref = next(it)

        a = ab_ref[0, 0:1, :]                                 # (1, Cin) f32
        bb = ab_ref[0, 1:2, :]
        x = x_ref[0]                                          # (TL, Cin) f32
        h = x * a + bb                                        # AdaGN normalize + affine (one FMA)
        if apply_gelu:
            h = _gelu(h)
        h = h.astype(jnp.bfloat16)
        TL, Cin = x.shape

        if ksize == 3:
            if use_halo:
                i = pl.program_id(1)
                hp = ph_ref[0, HALO - 1:HALO, :] * a + bb     # x[i*TL - 1]
                hn = nh_ref[0, 0:1, :] * a + bb               # x[(i+1)*TL]
                if apply_gelu:
                    hp = _gelu(hp)
                    hn = _gelu(hn)
                # Conv zero-padding applies to the conv INPUT h, so boundary halos are zeros.
                hp = jnp.where(i > 0, hp, 0.0).astype(jnp.bfloat16)
                hn = jnp.where(i < nl - 1, hn, 0.0).astype(jnp.bfloat16)
            else:
                hp = jnp.zeros((1, Cin), jnp.bfloat16)
                hn = jnp.zeros((1, Cin), jnp.bfloat16)
            hpad = jnp.concatenate([hp, h, hn], axis=0)       # (TL + 2, Cin)
            acc = jnp.dot(hpad[0:TL], w_ref[0], preferred_element_type=jnp.float32)
            acc = acc + jnp.dot(hpad[1:TL + 1], w_ref[1], preferred_element_type=jnp.float32)
            acc = acc + jnp.dot(hpad[2:TL + 2], w_ref[2], preferred_element_type=jnp.float32)
        else:
            acc = jnp.dot(h, w_ref[0], preferred_element_type=jnp.float32)

        acc = acc + b_ref[...]
        if skip_mode == "add":
            acc = acc + skip_ref[0]
        elif skip_mode == "conv":
            acc = acc + jnp.dot(skip_ref[0].astype(jnp.bfloat16), skip_w_ref[0],
                                preferred_element_type=jnp.float32)

        if split_qkv:
            C = acc.shape[1] // 3
            # Attention scale (dh**-0.5) folded into q here; q/k/v stored head-major per C block.
            o_ref[0, 0] = (acc[:, 0:C] * q_scale).astype(o_ref.dtype)
            o_ref[1, 0] = acc[:, C:2 * C].astype(o_ref.dtype)
            o_ref[2, 0] = acc[:, 2 * C:3 * C].astype(o_ref.dtype)
        else:
            o_ref[0] = acc.astype(o_ref.dtype)

    return kernel


@functools.partial(jax.jit, static_argnames=("ksize", "apply_gelu", "split_qkv", "q_scale"))
def fused_gn_conv_pallas(x, ab, w, bias, *, ksize, apply_gelu,
                         skip=None, skip_w=None, split_qkv=False, q_scale=1.0):
    # x:(B,L,Cin) f32  ab:(B,2,Cin) f32  w:(K,Cin,Cout) bf16  bias:(Cout,) f32
    # skip: residual tensor (identity add or 1x1-conv via skip_w), fused into the epilogue.
    B, L, Cin = x.shape
    Cout = w.shape[2]
    TL = _seq_tile(L, SEQ_TILE)
    nl = L // TL
    use_halo = (ksize == 3) and (nl > 1)
    skip_mode = "none" if skip is None else ("conv" if skip_w is not None else "add")

    in_specs = [pl.BlockSpec((1, TL, Cin), lambda b, i: (b, i, 0))]
    inputs = [x]
    if use_halo:
        nbl = TL // HALO
        nblk_total = L // HALO
        in_specs.append(pl.BlockSpec((1, HALO, Cin),
                                     lambda b, i: (b, jnp.maximum(i * nbl - 1, 0), 0)))
        in_specs.append(pl.BlockSpec((1, HALO, Cin),
                                     lambda b, i: (b, jnp.minimum((i + 1) * nbl, nblk_total - 1), 0)))
        inputs += [x, x]
    in_specs.append(pl.BlockSpec((1, 2, Cin), lambda b, i: (b, 0, 0)))
    inputs.append(ab)
    in_specs.append(pl.BlockSpec((ksize, Cin, Cout), lambda b, i: (0, 0, 0)))
    inputs.append(w)
    in_specs.append(pl.BlockSpec((1, Cout), lambda b, i: (0, 0)))
    inputs.append(bias.reshape(1, Cout))
    if skip is not None:
        Cs = skip.shape[2]
        in_specs.append(pl.BlockSpec((1, TL, Cs), lambda b, i: (b, i, 0)))
        inputs.append(skip)
        if skip_w is not None:
            in_specs.append(pl.BlockSpec((1, Cs, Cout), lambda b, i: (0, 0, 0)))
            inputs.append(skip_w)

    if split_qkv:
        C = Cout // 3
        out_shape = jax.ShapeDtypeStruct((3, B, L, C), jnp.bfloat16)
        out_specs = pl.BlockSpec((3, 1, TL, C), lambda b, i: (0, b, i, 0))
    else:
        out_shape = jax.ShapeDtypeStruct((B, L, Cout), jnp.float32)
        out_specs = pl.BlockSpec((1, TL, Cout), lambda b, i: (b, i, 0))

    kernel = _make_fused_gn_conv_kernel(ksize=ksize, apply_gelu=apply_gelu, use_halo=use_halo,
                                        skip_mode=skip_mode, split_qkv=split_qkv,
                                        q_scale=q_scale, nl=nl)
    return pl.pallas_call(
        kernel,
        out_shape=out_shape,
        grid=(B, nl),
        in_specs=in_specs,
        out_specs=out_specs,
        compiler_params=pltpu.CompilerParams(
            dimension_semantics=("parallel", "parallel"),
            vmem_limit_bytes=VMEM_LIMIT),
    )(*inputs)


# ----------------------------------------------------------------------------- plain 1x1 conv (+res)
def _conv1x1_kernel(x_ref, w_ref, b_ref, *rest, has_res):
    if has_res:
        r_ref, o_ref = rest
    else:
        (o_ref,) = rest
    y = jnp.dot(x_ref[0].astype(jnp.bfloat16), w_ref[0],
                preferred_element_type=jnp.float32) + b_ref[...]
    if has_res:
        y = y + r_ref[0]
    o_ref[0] = y.astype(o_ref.dtype)


@jax.jit
def conv1x1_pallas(x, w, b, residual=None):
    # proj_in / proj_out / attention out_proj (+ fused residual add)
    B, L, Cin = x.shape
    Cout = w.shape[2]
    TL = _seq_tile(L, SEQ_TILE)
    nl = L // TL
    has_res = residual is not None
    in_specs = [pl.BlockSpec((1, TL, Cin), lambda bb, i: (bb, i, 0)),
                pl.BlockSpec((1, Cin, Cout), lambda bb, i: (0, 0, 0)),
                pl.BlockSpec((1, Cout), lambda bb, i: (0, 0))]
    inputs = [x, w, b.reshape(1, Cout)]
    if has_res:
        in_specs.append(pl.BlockSpec((1, TL, Cout), lambda bb, i: (bb, i, 0)))
        inputs.append(residual)
    return pl.pallas_call(
        functools.partial(_conv1x1_kernel, has_res=has_res),
        out_shape=jax.ShapeDtypeStruct((B, L, Cout), jnp.float32),
        grid=(B, nl),
        in_specs=in_specs,
        out_specs=pl.BlockSpec((1, TL, Cout), lambda bb, i: (bb, i, 0)),
        compiler_params=pltpu.CompilerParams(
            dimension_semantics=("parallel", "parallel"),
            vmem_limit_bytes=VMEM_LIMIT),
    )(*inputs)


# ----------------------------------------------------------------------------- flash attention
def _attn_kernel(q_ref, k_ref, v_ref, o_ref, m_ref, l_ref, acc_ref, *, nh):
    j = pl.program_id(2)

    @pl.when(j == 0)
    def _():
        m_ref[...] = jnp.full(m_ref.shape, -1e30, jnp.float32)
        l_ref[...] = jnp.zeros(l_ref.shape, jnp.float32)
        acc_ref[...] = jnp.zeros(acc_ref.shape, jnp.float32)

    C = q_ref.shape[-1]
    dh = C // nh
    for h in range(nh):
        lo, hi = h * dh, (h + 1) * dh
        q = q_ref[0, 0, :, lo:hi]                             # (TQ, dh) bf16, pre-scaled
        k = k_ref[0, 0, :, lo:hi]
        v = v_ref[0, 0, :, lo:hi]
        s = jax.lax.dot_general(q, k, (((1,), (1,)), ((), ())),
                                preferred_element_type=jnp.float32)      # (TQ, TK)
        m_prev = m_ref[h]
        m_new = jnp.maximum(m_prev, jnp.max(s, axis=-1, keepdims=True))
        alpha = jnp.exp(m_prev - m_new)
        p = jnp.exp(s - m_new)
        l_ref[h] = alpha * l_ref[h] + jnp.sum(p, axis=-1, keepdims=True)
        acc_ref[:, lo:hi] = alpha * acc_ref[:, lo:hi] + jnp.dot(
            p.astype(v.dtype), v, preferred_element_type=jnp.float32)
        m_ref[h] = m_new

    @pl.when(j == pl.num_programs(2) - 1)
    def _():
        parts = [acc_ref[:, h * dh:(h + 1) * dh] * pl.reciprocal(l_ref[h], approx=True)
                 for h in range(nh)]
        y = parts[0] if nh == 1 else jnp.concatenate(parts, axis=-1)
        o_ref[0] = y.astype(o_ref.dtype)                      # one lane-dense (TQ, C) store


@functools.partial(jax.jit, static_argnums=(1,))
def attention_pallas(qkv, n_head):
    # qkv: (3, B, L, C) bf16 (q pre-scaled by dh**-0.5); output (B, L, C) f32, head-major channels.
    _, B, L, C = qkv.shape
    TQ = _seq_tile(L, ATTN_TILE)
    TK = _seq_tile(L, ATTN_TILE)
    nq, nk = L // TQ, L // TK
    return pl.pallas_call(
        functools.partial(_attn_kernel, nh=n_head),
        out_shape=jax.ShapeDtypeStruct((B, L, C), jnp.float32),
        grid=(B, nq, nk),
        in_specs=[
            pl.BlockSpec((1, 1, TQ, C), lambda b, i, j: (0, b, i, 0)),
            pl.BlockSpec((1, 1, TK, C), lambda b, i, j: (1, b, j, 0)),
            pl.BlockSpec((1, 1, TK, C), lambda b, i, j: (2, b, j, 0)),
        ],
        out_specs=pl.BlockSpec((1, TQ, C), lambda b, i, j: (b, i, 0)),
        scratch_shapes=[
            pltpu.VMEM((n_head, TQ, 1), jnp.float32),   # running max
            pltpu.VMEM((n_head, TQ, 1), jnp.float32),   # running denom
            pltpu.VMEM((TQ, C), jnp.float32),           # output accumulator (lane-dense)
        ],
        compiler_params=pltpu.CompilerParams(
            dimension_semantics=("parallel", "parallel", "arbitrary"),
            vmem_limit_bytes=VMEM_LIMIT),
    )(qkv, qkv, qkv)


# ----------------------------------------------------------------------------- plain-JAX glue ops
_RESAMPLE_KERNEL = jnp.array([1 / 8, 3 / 8, 3 / 8, 1 / 8], dtype=jnp.float32)


def downsample1d(x):
    # k-diffusion Downsample ('linear' FIR, reflect pad), 1-D: (B, L, C) -> (B, L//2, C)
    xp = jnp.pad(x, ((0, 0), (1, 1), (0, 0)), mode="reflect")
    Lout = x.shape[1] // 2
    k = _RESAMPLE_KERNEL
    return sum(k[i] * xp[:, i:i + 2 * Lout:2, :] for i in range(4))


def upsample1d(x):
    # k-diffusion Upsample (transposed FIR, reflect pad), 1-D: (B, L, C) -> (B, 2L, C)
    k = 2.0 * _RESAMPLE_KERNEL                                # [0.25, 0.75, 0.75, 0.25]
    xp = jnp.pad(x, ((0, 0), (1, 1), (0, 0)), mode="reflect")
    even = k[3] * xp[:, 0:-2, :] + k[1] * xp[:, 1:-1, :]
    odd = k[2] * xp[:, 1:-1, :] + k[0] * xp[:, 2:, :]
    B, L, C = x.shape
    return jnp.stack([even, odd], axis=2).reshape(B, 2 * L, C)


# ----------------------------------------------------------------------------- module forwards
def res_conv_block_forward(x, cond, p):
    # Stage 1: AdaGN + GELU + conv1(k=3)   -- one fused kernel (plus a tiny stats pass)
    ab1 = _adagn_affine(x, cond, p["gn1_w"], p["gn1_b"], p["groups1"])
    h = fused_gn_conv_pallas(x, ab1, p["conv1_w"], p["conv1_b"], ksize=3, apply_gelu=True)
    # Stage 2: AdaGN + GELU + conv2(k=3) + residual (identity or fused 1x1 skip conv)
    ab2 = _adagn_affine(h, cond, p["gn2_w"], p["gn2_b"], p["groups2"])
    out = fused_gn_conv_pallas(h, ab2, p["conv2_w"], p["conv2_b"], ksize=3, apply_gelu=True,
                               skip=x, skip_w=p["skip_w"])
    # TODO(synk): Dropout omitted (dropout_rate=0.0 / inference -> identity).
    return out


def self_attention_forward(x, cond, p):
    B, L, C = x.shape
    nh = p["n_head"]
    dh = C // nh
    ab = _adagn_affine(x, cond, p["norm_w"], p["norm_b"], p["norm_groups"])
    # AdaGN + qkv 1x1 conv fused; q scaled by dh**-0.5; output (3, B, L, C) bf16.
    qkv = fused_gn_conv_pallas(x, ab, p["qkv_w"], p["qkv_b"], ksize=1, apply_gelu=False,
                               split_qkv=True, q_scale=float(dh) ** -0.5)
    y = attention_pallas(qkv, nh)                             # (B, L, C) f32, head-major channels
    return conv1x1_pallas(y, p["out_w"], p["out_b"], residual=x)


def d_block_forward(x, cond, p):
    if p["downsample"]:
        x = downsample1d(x)
    for kind, lp in p["layers"]:
        x = res_conv_block_forward(x, cond, lp) if kind == "res" else self_attention_forward(x, cond, lp)
    return x


def u_block_forward(x, cond, p, skip=None):
    if skip is not None:
        x = jnp.concatenate([x, skip], axis=-1)
    for kind, lp in p["layers"]:
        x = res_conv_block_forward(x, cond, lp) if kind == "res" else self_attention_forward(x, cond, lp)
    if p["upsample"]:
        x = upsample1d(x)
    return x


def unet_forward(x, cond, params):
    skips = []
    for db in params["d_blocks"]:
        x = d_block_forward(x, cond, db)
        skips.append(x)
    for i, (ub, skip) in enumerate(zip(params["u_blocks"], reversed(skips))):
        x = u_block_forward(x, cond, ub, skip if i > 0 else None)
    return x


def audio_denoiser_forward(params, x, sigma, mapping_cond=None, unet_cond=None, log_sigma=True):
    # x: (B, c_in, L) NCL (PyTorch layout), sigma: (B,)
    if log_sigma:
        sigma = jnp.log(sigma) / 4.0
    c_noise = sigma
    while c_noise.ndim < 2:                                   # append_dims(c_noise, 2)
        c_noise = c_noise[..., None]
    # FourierFeatures (tiny (B,1)x(1,F/2) outer product -> plain JAX glue)
    f = 2.0 * math.pi * jnp.matmul(c_noise, params["fourier_w"].T)
    temb = jnp.concatenate([jnp.cos(f), jnp.sin(f)], axis=-1)
    if mapping_cond is None:
        mce = jnp.zeros_like(temb)
    else:
        mce = linear_pallas(mapping_cond, params["mapping_cond_w"],
                            jnp.zeros((temb.shape[-1],), jnp.float32), False)
    m = temb + mce
    cond = mapping_pallas(m, params["mapping"][0]["w"], params["mapping"][0]["b"],
                          params["mapping"][1]["w"], params["mapping"][1]["b"])   # (B, feats_in)

    h = jnp.transpose(x, (0, 2, 1))                           # NCL -> NLC
    if unet_cond is not None:
        h = jnp.concatenate([h, jnp.transpose(unet_cond, (0, 2, 1))], axis=-1)
    h = conv1x1_pallas(h, params["proj_in_w"], params["proj_in_b"])
    h = unet_forward(h, cond, params)
    h = conv1x1_pallas(h, params["proj_out_w"], params["proj_out_b"])
    return jnp.transpose(h, (0, 2, 1))                        # back to NCL


# ----------------------------------------------------------------------------- parameter init
class _KeyGen:
    def __init__(self, key):
        self.key = key

    def __call__(self):
        self.key, sub = jax.random.split(self.key)
        return sub


def _winit(kg, shape, fan_in, dtype=jnp.float32):
    w = jax.random.normal(kg(), shape, jnp.float32) / math.sqrt(max(1, fan_in))
    return w.astype(dtype)


def _make_res_block(kg, feats_in, c_in, c_mid, c_out):
    return {
        "gn1_w": _winit(kg, (feats_in, 2 * c_in), feats_in), "gn1_b": jnp.zeros((2 * c_in,), jnp.float32),
        "groups1": max(1, c_in // GROUP_SIZE),
        "conv1_w": _winit(kg, (3, c_in, c_mid), 3 * c_in, jnp.bfloat16),
        "conv1_b": jnp.zeros((c_mid,), jnp.float32),
        "gn2_w": _winit(kg, (feats_in, 2 * c_mid), feats_in), "gn2_b": jnp.zeros((2 * c_mid,), jnp.float32),
        "groups2": max(1, c_mid // GROUP_SIZE),
        "conv2_w": _winit(kg, (3, c_mid, c_out), 3 * c_mid, jnp.bfloat16),
        "conv2_b": jnp.zeros((c_out,), jnp.float32),
        "skip_w": None if c_in == c_out else _winit(kg, (1, c_in, c_out), c_in, jnp.bfloat16),
    }


def _make_attn_block(kg, feats_in, c):
    return {
        "norm_w": _winit(kg, (feats_in, 2 * c), feats_in), "norm_b": jnp.zeros((2 * c,), jnp.float32),
        "norm_groups": max(1, c // GROUP_SIZE),
        "qkv_w": _winit(kg, (1, c, 3 * c), c, jnp.bfloat16), "qkv_b": jnp.zeros((3 * c,), jnp.float32),
        "out_w": _winit(kg, (1, c, c), c, jnp.bfloat16), "out_b": jnp.zeros((c,), jnp.float32),
        "n_head": max(1, c // HEAD_SIZE),
    }


def _make_block(kg, n_layers, feats_in, c_in, c_mid, c_out, self_attn):
    layers = []
    for i in range(n_layers):
        my_c_in = c_in if i == 0 else c_mid
        my_c_out = c_mid if i < n_layers - 1 else c_out
        layers.append(("res", _make_res_block(kg, feats_in, my_c_in, c_mid, my_c_out)))
        if self_attn:
            layers.append(("attn", _make_attn_block(kg, feats_in, my_c_out)))
    return layers


def init_model(key, c_in, feats_in, depths, channels, self_attn_depths,
               mapping_cond_dim=0, unet_cond_dim=0):
    kg = _KeyGen(key)
    params = {
        "fourier_w": jax.random.normal(kg(), (feats_in // 2, 1), jnp.float32),   # std=1 (FourierFeatures)
        "mapping": [
            {"w": _winit(kg, (feats_in, feats_in), feats_in), "b": jnp.zeros((feats_in,), jnp.float32)},
            {"w": _winit(kg, (feats_in, feats_in), feats_in), "b": jnp.zeros((feats_in,), jnp.float32)},
        ],
        "proj_in_w": _winit(kg, (1, c_in + unet_cond_dim, channels[0]), c_in + unet_cond_dim, jnp.bfloat16),
        "proj_in_b": jnp.zeros((channels[0],), jnp.float32),
        # proj_out is zero-initialized per the reference module
        "proj_out_w": jnp.zeros((1, channels[0], c_in), jnp.bfloat16),
        "proj_out_b": jnp.zeros((c_in,), jnp.float32),
    }
    if mapping_cond_dim > 0:
        params["mapping_cond_w"] = _winit(kg, (mapping_cond_dim, feats_in), mapping_cond_dim)

    d_blocks, u_blocks = [], []
    for i in range(len(depths)):
        my_c_in = channels[i] if i == 0 else channels[i - 1]
        d_blocks.append({
            "downsample": i > 0,
            "layers": _make_block(kg, depths[i], feats_in, my_c_in, channels[i], channels[i],
                                  self_attn_depths[i]),
        })
    for i in range(len(depths)):
        my_c_in = channels[i] * 2 if i < len(depths) - 1 else channels[i]
        my_c_out = channels[i] if i == 0 else channels[i - 1]
        u_blocks.append({
            "upsample": i > 0,
            "layers": _make_block(kg, depths[i], feats_in, my_c_in, channels[i], my_c_out,
                                  self_attn_depths[i]),
        })
    params["d_blocks"] = d_blocks
    params["u_blocks"] = list(reversed(u_blocks))   # UNet(d_blocks, reversed(u_blocks))
    return params


# ----------------------------------------------------------------------------- demo
if __name__ == "__main__":
    B, C_IN, L = 2, 4, 16
    FEATS_IN = 32
    DEPTHS = [2, 2]
    CHANNELS = [32, 64]
    SELF_ATTN = [False, True]

    key = jax.random.PRNGKey(0)
    kp, kx, ks = jax.random.split(key, 3)
    params = init_model(kp, C_IN, FEATS_IN, DEPTHS, CHANNELS, SELF_ATTN)

    x = jax.random.normal(kx, (B, C_IN, L), jnp.float32)          # NCL, like PyTorch Conv1d input
    sigma = jax.random.uniform(ks, (B,), jnp.float32, 0.5, 2.0)   # positive noise levels

    fwd = jax.jit(lambda xx, ss: audio_denoiser_forward(params, xx, ss))
    out = jax.block_until_ready(fwd(x, sigma))

    assert out.shape == (B, C_IN, L), out.shape
    assert bool(jnp.all(jnp.isfinite(out)))
    print("KERNEL_OK")
</pallas_src>

<mosaic_0001>
module attributes {stable_mosaic.version = 11 : i64} {
  func.func @_mapping_kernel(%arg0: memref<2x32xf32, #tpu.memory_space<vmem>>, %arg1: memref<32x32xf32, #tpu.memory_space<vmem>>, %arg2: memref<1x32xf32, #tpu.memory_space<vmem>>, %arg3: memref<32x32xf32, #tpu.memory_space<vmem>>, %arg4: memref<1x32xf32, #tpu.memory_space<vmem>>, %arg5: memref<2x32xf32, #tpu.memory_space<vmem>>) attributes {dimension_semantics = [], scalar_prefetch = 0 : i64, scratch_operands = 0 : i64, tpu.core_type = #tpu.core_type<tc>} {
    %c0 = arith.constant 0 : index
    %c0_0 = arith.constant 0 : index
    %0 = vector.load %arg0[%c0, %c0_0] : memref<2x32xf32, #tpu.memory_space<vmem>>, vector<2x32xf32>
    %c0_1 = arith.constant 0 : index
    %c0_2 = arith.constant 0 : index
    %1 = vector.load %arg1[%c0_1, %c0_2] : memref<32x32xf32, #tpu.memory_space<vmem>>, vector<32x32xf32>
    %cst = arith.constant dense<0.000000e+00> : vector<2x32xf32>
    %2 = tpu.matmul %0, %1, %cst {dimension_numbers = #tpu.dot_dimension_numbers<[1], [0], [0], [1], [0, 0, 1, 1], [], []>} : vector<2x32xf32>, vector<32x32xf32>, vector<2x32xf32> -> vector<2x32xf32>
    %c0_3 = arith.constant 0 : index
    %c0_4 = arith.constant 0 : index
    %3 = vector.load %arg2[%c0_3, %c0_4] : memref<1x32xf32, #tpu.memory_space<vmem>>, vector<1x32xf32>
    %4 = vector.broadcast %3 : vector<1x32xf32> to vector<2x32xf32>
    %5 = arith.addf %2, %4 : vector<2x32xf32>
    %cst_5 = arith.constant 5.000000e-01 : f32
    %6 = vector.broadcast %cst_5 : f32 to vector<2x32xf32>
    %7 = arith.mulf %6, %5 : vector<2x32xf32>
    %cst_6 = arith.constant 4.471500e-02 : f32
    %8 = vector.broadcast %cst_6 : f32 to vector<2x32xf32>
    %9 = arith.mulf %8, %5 : vector<2x32xf32>
    %10 = arith.mulf %9, %5 : vector<2x32xf32>
    %11 = arith.mulf %10, %5 : vector<2x32xf32>
    %12 = arith.addf %5, %11 : vector<2x32xf32>
    %cst_7 = arith.constant 0.797884583 : f32
    %13 = vector.broadcast %cst_7 : f32 to vector<2x32xf32>
    %14 = arith.mulf %13, %12 : vector<2x32xf32>
    %15 = math.tanh %14 : vector<2x32xf32>
    %cst_8 = arith.constant 1.000000e+00 : f32
    %16 = vector.broadcast %cst_8 : f32 to vector<2x32xf32>
    %17 = arith.addf %16, %15 : vector<2x32xf32>
    %18 = arith.mulf %7, %17 : vector<2x32xf32>
    %c0_9 = arith.constant 0 : index
    %c0_10 = arith.constant 0 : index
    %19 = vector.load %arg3[%c0_9, %c0_10] : memref<32x32xf32, #tpu.memory_space<vmem>>, vector<32x32xf32>
    %cst_11 = arith.constant dense<0.000000e+00> : vector<2x32xf32>
    %20 = tpu.matmul %18, %19, %cst_11 {dimension_numbers = #tpu.dot_dimension_numbers<[1], [0], [0], [1], [0, 0, 1, 1], [], []>} : vector<2x32xf32>, vector<32x32xf32>, vector<2x32xf32> -> vector<2x32xf32>
    %c0_12 = arith.constant 0 : index
    %c0_13 = arith.constant 0 : index
    %21 = vector.load %arg4[%c0_12, %c0_13] : memref<1x32xf32, #tpu.memory_space<vmem>>, vector<1x32xf32>
    %22 = vector.broadcast %21 : vector<1x32xf32> to vector<2x32xf32>
    %23 = arith.addf %20, %22 : vector<2x32xf32>
    %cst_14 = arith.constant 5.000000e-01 : f32
    %24 = vector.broadcast %cst_14 : f32 to vector<2x32xf32>
    %25 = arith.mulf %24, %23 : vector<2x32xf32>
    %cst_15 = arith.constant 4.471500e-02 : f32
    %26 = vector.broadcast %cst_15 : f32 to vector<2x32xf32>
    %27 = arith.mulf %26, %23 : vector<2x32xf32>
    %28 = arith.mulf %27, %23 : vector<2x32xf32>
    %29 = arith.mulf %28, %23 : vector<2x32xf32>
    %30 = arith.addf %23, %29 : vector<2x32xf32>
    %cst_16 = arith.constant 0.797884583 : f32
    %31 = vector.broadcast %cst_16 : f32 to vector<2x32xf32>
    %32 = arith.mulf %31, %30 : vector<2x32xf32>
    %33 = math.tanh %32 : vector<2x32xf32>
    %cst_17 = arith.constant 1.000000e+00 : f32
    %34 = vector.broadcast %cst_17 : f32 to vector<2x32xf32>
    %35 = arith.addf %34, %33 : vector<2x32xf32>
    %36 = arith.mulf %25, %35 : vector<2x32xf32>
    %c0_18 = arith.constant 0 : index
    %c0_19 = arith.constant 0 : index
    %37 = vector.load %arg5[%c0_18, %c0_19] : memref<2x32xf32, #tpu.memory_space<vmem>>, vector<2x32xf32>
    tpu.vector_store %arg5[%c0_18, %c0_19], %36 {strides = array<i32>} : memref<2x32xf32, #tpu.memory_space<vmem>>, vector<2x32xf32>,
    return
  }
}

</mosaic_0001>

<llo_original>
// kernel: mapping_pallas.1
$region0: #{mapping_pallas.1}
  #allocation0 [shape = 'u32[]', space=smem, size = 0x4, offset = 0x4, fixed_abs, tag = 'smem constant byte address 0x4 - core index']
  #allocation1 [shape = 'u32[144,128]{1,0:T(1,128)}', space=vmem, size = 0x12000, scoped, tag = 'internal scratch']
  %s0 = inlined_call_operand.vmem [shape: f32[2,32], index: 0, kind: input, shape index: {}]
  %s1 = inlined_call_operand.hbm [shape: f32[32,32], index: 1, kind: input, shape index: {}]
  %s2 = inlined_call_operand.vmem [shape: f32[1,32], index: 2, kind: input, shape index: {}]
  %s3 = inlined_call_operand.hbm [shape: f32[32,32], index: 3, kind: input, shape index: {}]
  %s4 = inlined_call_operand.vmem [shape: f32[1,32], index: 4, kind: input, shape index: {}]
  %s5 = inlined_call_operand.hbm [shape: f32[2,32], index: 5, kind: output, shape index: {}]
  %s6 = sld [smem:[#allocation0]]
  $region38: #{mapping_pallas.1} parent=0
    _
  %s8 = ssub.s32 1, %s6
  %s9 = scalar_select 0, %s8, %s6
  $region1: #{mapping_pallas.1} parent=0
    #allocation2 [shape = 'u8[16384]{0}', space=vmem, size = 0x4000, scoped, tag = 'input window, operand 1, single buffered']
    #allocation3 [shape = 's32[1]{0}', space=sflag, size = 0x4, scoped, tag = 'scoped memory for mapping_pallas.1']
    #allocation4 [shape = 's32[1]{0}', space=sflag, size = 0x4, scoped, tag = 'scoped memory for mapping_pallas.1']
    #allocation5 [shape = 'u8[16384]{0}', space=vmem, size = 0x4000, scoped, tag = 'input window, operand 3, single buffered']
    #allocation6 [shape = 's32[1]{0}', space=sflag, size = 0x4, scoped, tag = 'scoped memory for mapping_pallas.1']
    #allocation7 [shape = 'u8[1024]{0}', space=vmem, size = 0x400, scoped, tag = 'output window, operand 0, single buffered']
    %10 = vsyncpa [#allocation3], 0
    %11 = vsyncpa [#allocation6], 0
    %12 = vsyncpa [#allocation4], 0
    // Predicated region
    $region2: #{mapping_pallas.1} parent=1 // pred_check
      _
    $region3: #{mapping_pallas.1} parent=1 // pred_check_branch
      %14 = sbr.rel (0) target = $region5
    $region4: #{mapping_pallas.1} parent=1 // pred_region
      _
    $region5: #{mapping_pallas.1} parent=1 // pred_fallthru
      _
    // Predicated region
    $region6: #{mapping_pallas.1} parent=1 // pred_check
      _
    $region7: #{mapping_pallas.1} parent=1 // pred_check_branch
      %16 = sbr.rel (0) target = $region9
    $region8: #{mapping_pallas.1} parent=1 // pred_region
      %s18 = ssub.s32 512, 512
      %19 = vsyncadd [#allocation3], %s18
      %s20 = sshll.u32 [#allocation2], 4
      %s21 = int_to_ptr.vmem [resolvable:$true] %s20
      %26 = dma.hbm_to_vmem [thread:$0]  %s1, 512, %s21, [#allocation3], 128, 128, 8
    $region9: #{mapping_pallas.1} parent=1 // pred_fallthru
      _
    // Predicated region
    $region10: #{mapping_pallas.1} parent=1 // pred_check
      _
    $region11: #{mapping_pallas.1} parent=1 // pred_check_branch
      %28 = sbr.rel (0) target = $region13
    $region12: #{mapping_pallas.1} parent=1 // pred_region
      _
    $region13: #{mapping_pallas.1} parent=1 // pred_fallthru
      _
    // Predicated region
    $region14: #{mapping_pallas.1} parent=1 // pred_check
      _
    $region15: #{mapping_pallas.1} parent=1 // pred_check_branch
      %30 = sbr.rel (0) target = $region17
    $region16: #{mapping_pallas.1} parent=1 // pred_region
      %s32 = ssub.s32 512, 512
      %33 = vsyncadd [#allocation6], %s32
      %s34 = sshll.u32 [#allocation5], 4
      %s35 = int_to_ptr.vmem [resolvable:$true] %s34
      %40 = dma.hbm_to_vmem [thread:$0]  %s3, 512, %s35, [#allocation6], 128, 128, 8
    $region17: #{mapping_pallas.1} parent=1 // pred_fallthru
      _
    // Predicated region
    $region18: #{mapping_pallas.1} parent=1 // pred_check
      _
    $region19: #{mapping_pallas.1} parent=1 // pred_check_branch
      %42 = sbr.rel (0) target = $region21
    $region20: #{mapping_pallas.1} parent=1 // pred_region
      _
    $region21: #{mapping_pallas.1} parent=1 // pred_fallthru
      _
    // Predicated region
    $region22: #{mapping_pallas.1} parent=1 // pred_check
      _
    $region23: #{mapping_pallas.1} parent=1 // pred_check_branch
      %44 = sbr.rel (0) target = $region25
    $region24: #{mapping_pallas.1} parent=1 // pred_region
      %45 = dma.done [#allocation3], 512
    $region25: #{mapping_pallas.1} parent=1 // pred_fallthru
      _
    // Predicated region
    $region26: #{mapping_pallas.1} parent=1 // pred_check
      _
    $region27: #{mapping_pallas.1} parent=1 // pred_check_branch
      %47 = sbr.rel (0) target = $region29
    $region28: #{mapping_pallas.1} parent=1 // pred_region
      %48 = dma.done [#allocation6], 512
    $region29: #{mapping_pallas.1} parent=1 // pred_fallthru
      _
    %v49 = vld [vmem:[%s0] sm:$0x3]
    %v50 = vld [vmem:[#allocation2] sm:$0xff]
    %v51 = vld [vmem:[#allocation2 + $0x8] sm:$0xff]
    %v52 = vld [vmem:[#allocation2 + $0x10] sm:$0xff]
    %v53 = vld [vmem:[#allocation2 + $0x18] sm:$0xff]
    %v54 = vld [vmem:[%s2] sm:$0x1]
    %v56 = vlaneseq
    %v57 = vshrl.u32 %v56, 7
    %v58 = vsub.s32 0, %v57
    %v59 = vrot.slane %v54, %v58
    %vm61 = vcmask 261120
    %v63 = vsel %vm61, %v49, 0
    %65 = vmatprep.subr.mxu0 0.0
    %66 = vmatpush1.msra.mxu0 %v50
    %67 = vmatprep.subr.mxu0 0.0
    %68 = vmatpush1.msra.mxu0 %v51
    %69 = vmatprep.subr.mxu0 0.0
    %70 = vmatpush1.msra.mxu0 %v52
    %71 = vmatprep.subr.mxu0 0.0
    %72 = vmatpush1.msra.mxu0 %v53
    %73 = vmatprep.subr.mxu0 0.0
    %74 = vmatpush1.msra.mxu0 0.0
    %75 = vmatprep.subr.mxu0 0.0
    %76 = vmatpush1.msra.mxu0 0.0
    %77 = vmatprep.subr.mxu0 0.0
    %78 = vmatpush1.msra.mxu0 0.0
    %79 = vmatprep.subr.mxu0 0.0
    %80 = vmatpush1.msra.mxu0 0.0
    %81 = vmatprep.subr.mxu0 0.0
    %82 = vmatpush1.msra.mxu0 0.0
    %83 = vmatprep.subr.mxu0 0.0
    %84 = vmatpush1.msra.mxu0 0.0
    %85 = vmatprep.subr.mxu0 0.0
    %86 = vmatpush1.msra.mxu0 0.0
    %87 = vmatprep.subr.mxu0 0.0
    %88 = vmatpush1.msra.mxu0 0.0
    %89 = vmatprep.subr.mxu0 0.0
    %90 = vmatpush1.msra.mxu0 0.0
    %91 = vmatprep.subr.mxu0 0.0
    %92 = vmatpush1.msra.mxu0 0.0
    %93 = vmatprep.subr.mxu0 0.0
    %94 = vmatpush1.msra.mxu0 0.0
    %95 = vmatprep.subr.mxu0 0.0
    %96 = vmatpush1.msra.mxu0 0.0
    %97 = vmatprep.subr.mxu0 0.0
    %98 = vmatpush1.msra.mxu0 0.0
    %99 = vmatprep.subr.mxu0 0.0
    %100 = vmatpush1.msra.mxu0 0.0
    %101 = vmatprep.subr.mxu0 0.0
    %102 = vmatpush1.msra.mxu0 0.0
    %103 = vmatprep.subr.mxu0 0.0
    %104 = vmatpush1.msra.mxu0 0.0
    %105 = vmatprep.subr.mxu0 0.0
    %106 = vmatpush1.msra.mxu0 0.0
    %107 = vmatprep.subr.mxu0 0.0
    %108 = vmatpush1.msra.mxu0 0.0
    %109 = vmatprep.subr.mxu0 0.0
    %110 = vmatpush1.msra.mxu0 0.0
    %111 = vmatprep.subr.mxu0 0.0
    %112 = vmatpush1.msra.mxu0 0.0
    %113 = vmatprep.subr.mxu0 0.0
    %114 = vmatpush1.msra.mxu0 0.0
    %115 = vmatprep.subr.mxu0 0.0
    %116 = vmatpush1.msra.mxu0 0.0
    %117 = vmatprep.subr.mxu0 0.0
    %118 = vmatpush1.msra.mxu0 0.0
    %119 = vmatprep.subr.mxu0 0.0
    %120 = vmatpush1.msra.mxu0 0.0
    %121 = vmatprep.subr.mxu0 0.0
    %122 = vmatpush1.msra.mxu0 0.0
    %123 = vmatprep.subr.mxu0 0.0
    %124 = vmatpush1.msra.mxu0 0.0
    %125 = vmatprep.subr.mxu0 0.0
    %126 = vmatpush1.msra.mxu0 0.0
    %127 = vmatprep.subr.mxu0 0.0
    %128 = vmatpush1.msra.mxu0 0.0
    %129 = vmatprep.mubr.f32.mxu0 0.0
    %130 = vmatmul.mubr.f32.gmra.mrb[0].mxu0 %v63
    %v131 = vpop.f32.mrb[0].mxu0
    %v132 = vadd.f32 %v59, %v131
    %v133 = vpop.f32.mrb[0].mxu0
    %134 = vdwg.mxu0
    %v135 = vmul.f32 %v132, 0.5
    %v136 = vmul.f32 %v132, 0.044715
    %v137 = vmul.f32 %v136, %v132
    %v138 = vmul.f32 %v137, %v132
    %v139 = vadd.f32 %v132, %v138
    %v140 = vmul.f32 %v139, 0.7978846
    %v141 = vtanh.pop %v140
    %v142 = vadd.f32 %v141, 1.0
    %v143 = vmul.f32 %v135, %v142
    %v144 = vld [vmem:[#allocation5] sm:$0xff]
    %v145 = vld [vmem:[#allocation5 + $0x8] sm:$0xff]
    %v146 = vld [vmem:[#allocation5 + $0x10] sm:$0xff]
    %v147 = vld [vmem:[#allocation5 + $0x18] sm:$0xff]
    %v148 = vld [vmem:[%s4] sm:$0x1]
    %v150 = vlaneseq
    %v151 = vshrl.u32 %v150, 7
    %v152 = vsub.s32 0, %v151
    %v153 = vrot.slane %v148, %v152
    %v156 = vsel %vm61, %v143, 0
    %158 = vmatprep.subr.mxu0 0.0
    %159 = vmatpush1.msra.mxu0 %v144
    %160 = vmatprep.subr.mxu0 0.0
    %161 = vmatpush1.msra.mxu0 %v145
    %162 = vmatprep.subr.mxu0 0.0
    %163 = vmatpush1.msra.mxu0 %v146
    %164 = vmatprep.subr.mxu0 0.0
    %165 = vmatpush1.msra.mxu0 %v147
    %166 = vmatprep.subr.mxu0 0.0
    %167 = vmatpush1.msra.mxu0 0.0
    %168 = vmatprep.subr.mxu0 0.0
    %169 = vmatpush1.msra.mxu0 0.0
    %170 = vmatprep.subr.mxu0 0.0
    %171 = vmatpush1.msra.mxu0 0.0
    %172 = vmatprep.subr.mxu0 0.0
    %173 = vmatpush1.msra.mxu0 0.0
    %174 = vmatprep.subr.mxu0 0.0
    %175 = vmatpush1.msra.mxu0 0.0
    %176 = vmatprep.subr.mxu0 0.0
    %177 = vmatpush1.msra.mxu0 0.0
    %178 = vmatprep.subr.mxu0 0.0
    %179 = vmatpush1.msra.mxu0 0.0
    %180 = vmatprep.subr.mxu0 0.0
    %181 = vmatpush1.msra.mxu0 0.0
    %182 = vmatprep.subr.mxu0 0.0
    %183 = vmatpush1.msra.mxu0 0.0
    %184 = vmatprep.subr.mxu0 0.0
    %185 = vmatpush1.msra.mxu0 0.0
    %186 = vmatprep.subr.mxu0 0.0
    %187 = vmatpush1.msra.mxu0 0.0
    %188 = vmatprep.subr.mxu0 0.0
    %189 = vmatpush1.msra.mxu0 0.0
    %190 = vmatprep.subr.mxu0 0.0
    %191 = vmatpush1.msra.mxu0 0.0
    %192 = vmatprep.subr.mxu0 0.0
    %193 = vmatpush1.msra.mxu0 0.0
    %194 = vmatprep.subr.mxu0 0.0
    %195 = vmatpush1.msra.mxu0 0.0
    %196 = vmatprep.subr.mxu0 0.0
    %197 = vmatpush1.msra.mxu0 0.0
    %198 = vmatprep.subr.mxu0 0.0
    %199 = vmatpush1.msra.mxu0 0.0
    %200 = vmatprep.subr.mxu0 0.0
    %201 = vmatpush1.msra.mxu0 0.0
    %202 = vmatprep.subr.mxu0 0.0
    %203 = vmatpush1.msra.mxu0 0.0
    %204 = vmatprep.subr.mxu0 0.0
    %205 = vmatpush1.msra.mxu0 0.0
    %206 = vmatprep.subr.mxu0 0.0
    %207 = vmatpush1.msra.mxu0 0.0
    %208 = vmatprep.subr.mxu0 0.0
    %209 = vmatpush1.msra.mxu0 0.0
    %210 = vmatprep.subr.mxu0 0.0
    %211 = vmatpush1.msra.mxu0 0.0
    %212 = vmatprep.subr.mxu0 0.0
    %213 = vmatpush1.msra.mxu0 0.0
    %214 = vmatprep.subr.mxu0 0.0
    %215 = vmatpush1.msra.mxu0 0.0
    %216 = vmatprep.subr.mxu0 0.0
    %217 = vmatpush1.msra.mxu0 0.0
    %218 = vmatprep.subr.mxu0 0.0
    %219 = vmatpush1.msra.mxu0 0.0
    %220 = vmatprep.subr.mxu0 0.0
    %221 = vmatpush1.msra.mxu0 0.0
    %222 = vmatprep.mubr.f32.mxu0 0.0
    %223 = vmatmul.mubr.f32.gmra.mrb[0].mxu0 %v156
    %v224 = vpop.f32.mrb[0].mxu0
    %v225 = vadd.f32 %v153, %v224
    %v226 = vpop.f32.mrb[0].mxu0
    %227 = vdwg.mxu0
    %v228 = vmul.f32 %v225, 0.5
    %v229 = vmul.f32 %v225, 0.044715
    %v230 = vmul.f32 %v229, %v225
    %v231 = vmul.f32 %v230, %v225
    %v232 = vadd.f32 %v225, %v231
    %v233 = vmul.f32 %v232, 0.7978846
    %v234 = vtanh.pop %v233
    %v235 = vadd.f32 %v234, 1.0
    %v236 = vmul.f32 %v228, %v235
    %vm237 = vcmask 254976
    %238 = vst.msk [vmem:[#allocation7] sm:$0x3] %vm237, %v236
    // Predicated region
    $region30: #{mapping_pallas.1} parent=1 // pred_check
      _
    $region31: #{mapping_pallas.1} parent=1 // pred_check_branch
      %240 = sbr.rel (0) target = $region33
    $region32: #{mapping_pallas.1} parent=1 // pred_region
      %s242 = ssub.s32 32, 32
      %243 = vsyncadd [#allocation4], %s242
      %s245 = sshll.u32 [#allocation7], 4
      %s246 = int_to_ptr.vmem [resolvable:$true] %s245
      %248 = dma.vmem_to_hbm [thread:$0]  %s246, 32, %s5, [#allocation4]
    $region33: #{mapping_pallas.1} parent=1 // pred_fallthru
      _
    // Predicated region
    $region34: #{mapping_pallas.1} parent=1 // pred_check
      _
    $region35: #{mapping_pallas.1} parent=1 // pred_check_branch
      %250 = sbr.rel (0) target = $region37
    $region36: #{mapping_pallas.1} parent=1 // pred_region
      %251 = dma.done [#allocation4], 32
    $region37: #{mapping_pallas.1} parent=1 // pred_fallthru
      _
    %252 = vsyncpa [#allocation3], 1
    %253 = vsyncpa [#allocation6], 1
    %254 = vsyncpa [#allocation4], 1

</llo_original>
